<compile_context>
chip_gen: v7x
topology: tpu7x:2x2x1
jax: 0.10.0
libtpu: 0.0.40
codegen_flags: <defaults>
</compile_context>

<pallas_src>
import functools

import numpy as np
import jax
import jax.numpy as jnp
from jax.experimental import pallas as pl
from jax.experimental.pallas import tpu as pltpu

meanstd_dataset = {
    'cifar10': [[0.49139968, 0.48215827, 0.44653124],
                [0.24703233, 0.24348505, 0.26158768]],
    'mnist': [[0.13066051707548254], [0.30810780244715075]],
    'fashionmnist': [[0.28604063146254594], [0.35302426207299326]],
    'imagenet': [[0.485, 0.456, 0.406], [0.229, 0.224, 0.225]],
    'tinyimagenet': [[0.485, 0.456, 0.406], [0.229, 0.224, 0.225]],
    'tinyimagenet_64': [[0.485, 0.456, 0.406], [0.229, 0.224, 0.225]],
}

_MAX_TC = 8192          # lane-tile cap (multiple of 128)
_BUDGET_CACHE = None    # (tile_bytes, vmem_limit_bytes), resolved once


def _vmem_budget():
    """Pick (tile_bytes, vmem_limit_bytes) from the chip's physical VMEM.

    Pipelined footprint is ~4x the data tile (double-buffered in + out) plus
    small stat buffers, so tile_bytes is sized to keep that inside the limit.
    """
    global _BUDGET_CACHE
    if _BUDGET_CACHE is None:
        try:
            vmem = int(pltpu.get_tpu_info().vmem_capacity_bytes)
        except Exception:
            vmem = 0
        if vmem >= (96 << 20):                       # v5e / v6e: 128 MiB physical
            _BUDGET_CACHE = (8 << 20, 48 << 20)
        elif vmem > 0:                               # v7x: 64 MiB physical
            _BUDGET_CACHE = (5 << 20, 32 << 20)
        else:                                        # unknown: conservative
            _BUDGET_CACHE = (4 << 20, 32 << 20)
    return _BUDGET_CACHE


def _pick_tc(cols, cap=_MAX_TC):
    """Lane tile: full width if it fits (one contiguous HBM run per row tile),
    else the largest multiple of 128 <= cap, preferring an even divisor of
    `cols` so there is no masked partial column tile."""
    if cols <= cap:
        return cols                                  # equals full dim -> legal
    t = (cap // 128) * 128
    while t >= 128:
        if cols % t == 0:
            return t
        t -= 128
    return (cap // 128) * 128                        # partial edge tile (masked store)


def _pick_tr(rows, tc, itemsize, tile_bytes):
    """Row tile: as many sublanes as fit the per-tile byte budget, preferring
    an even row-tile count so v7x's two TensorCores split the parallel grid."""
    budget_tr = max(8, (tile_bytes // max(tc * itemsize, 1)) // 8 * 8)
    if rows <= budget_tr:
        return rows                                  # full dim -> legal block shape
    t = budget_tr
    while t >= 8:
        if (-(-rows // t)) % 2 == 0:
            return t
        t -= 8
    return budget_tr


def _lane_dense_shape(total, cap=_MAX_TC):
    """For scalar-stat inputs: a 2-D view whose last dim is a large multiple
    of 128 that evenly divides the element count (unmasked, lane-dense
    stores). Returns None if no such factorization exists."""
    t = min((cap // 128) * 128, (total // 128) * 128)
    while t >= 128:
        if total % t == 0:
            return (total // t, t)
        t -= 128
    return None


def _normalize_kernel(x_ref, sb_ref, o_ref):
    # sb_ref: (tr, 2) f32 — column 0 = 1/std, column 1 = -mean/std per row.
    # Compute in f32 so bf16 inputs keep full precision through the FMA.
    x = x_ref[...].astype(jnp.float32)
    o_ref[...] = (x * sb_ref[:, 0:1] + sb_ref[:, 1:2]).astype(o_ref.dtype)


def _normalize_uniform_kernel(x_ref, o_ref, *, scale, bias):
    # C == 1: stats are compile-time Python floats baked into the kernel.
    x = x_ref[...].astype(jnp.float32)
    o_ref[...] = (x * scale + bias).astype(o_ref.dtype)


class Normalize:
    """JAX/Pallas port of the PyTorch Normalize module."""

    def __init__(self, dataset, input_channels, input_size):
        self.input_size = input_size
        self.input_channels = input_channels
        mean, std = meanstd_dataset[dataset.lower()]
        mean = np.asarray(mean, dtype=np.float32)          # (C,)
        std = np.asarray(std, dtype=np.float32)            # (C,)
        # Fold the divide into an affine transform:
        #   (x - mean) / std == x * (1/std) + (-mean/std)
        # (adds ~1 ulp of rounding vs the literal sub/div — within 1e-6 abs.)
        scale_np = (1.0 / std).astype(np.float32)
        bias_np = (-mean / std).astype(np.float32)
        self.mean = jnp.asarray(mean)                      # kept for reference
        self.std = jnp.asarray(std)
        self._scale0 = float(scale_np[0])                  # scalars for C == 1 path
        self._bias0 = float(bias_np[0])
        # (C, 2): col 0 = scale, col 1 = bias — single merged stat operand.
        self._sb_c = jnp.stack([jnp.asarray(scale_np), jnp.asarray(bias_np)], axis=1)
        self._sb_cache = {}                                # bounded per-B cache

    # ---- per-(batch, channel) merged scale/bias rows ------------------------
    def _stat_rows(self, B):
        sb = self._sb_cache.get(B)
        if sb is None:
            if len(self._sb_cache) >= 8:                   # keep cache bounded
                self._sb_cache.clear()
            sb = jnp.tile(self._sb_c, (B, 1))              # (B*C, 2) f32
            self._sb_cache[B] = sb
        return sb

    # ---- general path: per-channel stats ------------------------------------
    def _call_per_channel(self, x, out_dtype):
        B, C, H, W = x.shape
        rows, cols = B * C, H * W
        x2d = x.reshape(rows, cols)
        sb = self._stat_rows(B)

        tile_bytes, vmem_limit = _vmem_budget()
        tc = _pick_tc(cols)
        tr = _pick_tr(rows, tc, x.dtype.itemsize, tile_bytes)
        grid = (pl.cdiv(rows, tr), pl.cdiv(cols, tc))
        # Note: partial edge tiles (rows % tr or cols % tc != 0) read past the
        # logical end of x2d/sb; that is safe because Pallas masks OOB output
        # writeback — only in-bounds elements are stored.

        out2d = pl.pallas_call(
            _normalize_kernel,
            out_shape=jax.ShapeDtypeStruct((rows, cols), out_dtype),
            grid_spec=pltpu.PrefetchScalarGridSpec(
                num_scalar_prefetch=0,
                grid=grid,
                in_specs=[
                    pl.BlockSpec((tr, tc), lambda i, j: (i, j)),
                    pl.BlockSpec((tr, 2), lambda i, j: (i, 0)),
                ],
                out_specs=pl.BlockSpec((tr, tc), lambda i, j: (i, j)),
            ),
            compiler_params=pltpu.CompilerParams(
                dimension_semantics=("parallel", "parallel"),
                vmem_limit_bytes=vmem_limit),
            # Could alias x -> out to save an HBM write, but adversarial
            # training re-uses the un-normalized input, so keep it out-of-place.
        )(x2d, sb)
        return out2d.reshape(B, C, H, W)

    # ---- C == 1 path: scalar stats, lane-dense view --------------------------
    def _call_uniform(self, x, out_dtype):
        B, C, H, W = x.shape
        total = B * C * H * W
        shape2d = _lane_dense_shape(total)
        if shape2d is None:
            shape2d = (B * C, H * W)                       # fallback streaming view
        rows, cols = shape2d
        x2d = x.reshape(rows, cols)

        tile_bytes, vmem_limit = _vmem_budget()
        tc = _pick_tc(cols)
        tr = _pick_tr(rows, tc, x.dtype.itemsize, tile_bytes)
        grid = (pl.cdiv(rows, tr), pl.cdiv(cols, tc))

        kernel = functools.partial(_normalize_uniform_kernel,
                                   scale=self._scale0, bias=self._bias0)
        out2d = pl.pallas_call(
            kernel,
            out_shape=jax.ShapeDtypeStruct((rows, cols), out_dtype),
            grid_spec=pltpu.PrefetchScalarGridSpec(
                num_scalar_prefetch=0,
                grid=grid,
                in_specs=[pl.BlockSpec((tr, tc), lambda i, j: (i, j))],
                out_specs=pl.BlockSpec((tr, tc), lambda i, j: (i, j)),
            ),
            compiler_params=pltpu.CompilerParams(
                dimension_semantics=("parallel", "parallel"),
                vmem_limit_bytes=vmem_limit),
        )(x2d)
        return out2d.reshape(B, C, H, W)

    # ---- public API ----------------------------------------------------------
    def __call__(self, x, out_dtype=None):
        B, C, H, W = x.shape
        assert C == self.input_channels
        assert H == self.input_size and W == self.input_size
        out_dtype = x.dtype if out_dtype is None else jnp.dtype(out_dtype)
        if C == 1:
            return self._call_uniform(x, out_dtype)
        return self._call_per_channel(x, out_dtype)


if __name__ == "__main__":
    key = jax.random.PRNGKey(0)
    k1, k2 = jax.random.split(key)

    # CIFAR-10 style input: exercises the per-channel stat path.
    B, C, H, W = 2, 3, 16, 16
    x = jax.random.uniform(k1, (B, C, H, W), dtype=jnp.float32)
    model = Normalize("cifar10", input_channels=C, input_size=H)
    out = jax.block_until_ready(model(x))
    ref = (x - model.mean.reshape(1, C, 1, 1)) / model.std.reshape(1, C, 1, 1)
    np.testing.assert_allclose(np.asarray(out), np.asarray(ref),
                               rtol=1e-5, atol=1e-6)

    # MNIST style input: exercises the single-channel (scalar stat) path.
    B2, C2, H2, W2 = 2, 1, 28, 28
    x2 = jax.random.uniform(k2, (B2, C2, H2, W2), dtype=jnp.float32)
    model2 = Normalize("mnist", input_channels=C2, input_size=H2)
    out2 = jax.block_until_ready(model2(x2))
    ref2 = (x2 - model2.mean.reshape(1, C2, 1, 1)) / model2.std.reshape(1, C2, 1, 1)
    np.testing.assert_allclose(np.asarray(out2), np.asarray(ref2),
                               rtol=1e-5, atol=1e-6)

    print("KERNEL_OK")
</pallas_src>

<mosaic_0001>
module attributes {stable_mosaic.version = 11 : i64} {
  func.func @_normalize_kernel(%arg0: i32, %arg1: i32, %arg2: memref<6x256xf32, #tpu.memory_space<vmem>>, %arg3: memref<6x2xf32, #tpu.memory_space<vmem>>, %arg4: memref<6x256xf32, #tpu.memory_space<vmem>>) attributes {dimension_semantics = [#tpu.dimension_semantics<parallel>, #tpu.dimension_semantics<parallel>], iteration_bounds = array<i64: 1, 1>, scalar_prefetch = 0 : i64, scratch_operands = 0 : i64, tpu.core_type = #tpu.core_type<tc>, window_params = [{transform_indices = @transform_0, window_bounds = array<i64: 6, 256>}, {transform_indices = @transform_1, window_bounds = array<i64: 6, 2>}, {transform_indices = @transform_2, window_bounds = array<i64: 6, 256>}]} {
    %c0 = arith.constant 0 : index
    %c0_0 = arith.constant 0 : index
    %0 = vector.load %arg2[%c0, %c0_0] : memref<6x256xf32, #tpu.memory_space<vmem>>, vector<6x256xf32>
    %c0_1 = arith.constant 0 : index
    %c0_2 = arith.constant 0 : index
    %1 = vector.load %arg3[%c0_1, %c0_2] : memref<6x2xf32, #tpu.memory_space<vmem>>, vector<6x1xf32>
    %2 = vector.broadcast %1 : vector<6x1xf32> to vector<6x256xf32>
    %3 = arith.mulf %0, %2 : vector<6x256xf32>
    %c0_3 = arith.constant 0 : index
    %c1 = arith.constant 1 : index
    %4 = vector.load %arg3[%c0_3, %c1] : memref<6x2xf32, #tpu.memory_space<vmem>>, vector<6x1xf32>
    %5 = vector.broadcast %4 : vector<6x1xf32> to vector<6x256xf32>
    %6 = arith.addf %3, %5 : vector<6x256xf32>
    %c0_4 = arith.constant 0 : index
    %c0_5 = arith.constant 0 : index
    %7 = vector.load %arg4[%c0_4, %c0_5] : memref<6x256xf32, #tpu.memory_space<vmem>>, vector<6x256xf32>
    tpu.vector_store %arg4[%c0_4, %c0_5], %6 {strides = array<i32>} : memref<6x256xf32, #tpu.memory_space<vmem>>, vector<6x256xf32>,
    return
  }
  func.func @transform_0(%arg0: i32, %arg1: i32) -> (i32, i32) {
    %c0_i32 = arith.constant 0 : i32
    return %arg0, %arg1 : i32, i32
  }
  func.func @transform_1(%arg0: i32, %arg1: i32) -> (i32, i32) {
    %c0_i32 = arith.constant 0 : i32
    %c0_i32_0 = arith.constant 0 : i32
    return %arg0, %c0_i32 : i32, i32
  }
  func.func @transform_2(%arg0: i32, %arg1: i32) -> (i32, i32) {
    %c0_i32 = arith.constant 0 : i32
    return %arg0, %arg1 : i32, i32
  }
}

</mosaic_0001>

<llo_original>
// kernel: tpu_custom_call.1
$region0: #{tpu_custom_call.1}
  #allocation0 [shape = 'u32[]', space=smem, size = 0x4, offset = 0x4, fixed_abs, tag = 'smem constant byte address 0x4 - core index']
  #allocation1 [shape = 'u32[144,128]{1,0:T(1,128)}', space=vmem, size = 0x12000, scoped, tag = 'internal scratch']
  %s0 = inlined_call_operand.hbm [shape: f32[6,256], index: 0, kind: input, shape index: {}]
  %s1 = inlined_call_operand.vmem [shape: f32[6,2], index: 1, kind: input, shape index: {}]
  %s2 = inlined_call_operand.hbm [shape: f32[6,256], index: 2, kind: output, shape index: {}]
  %s3 = sld [smem:[#allocation0]]
  $region22: #{tpu_custom_call.1} parent=0
    _
  %s5 = ssub.s32 1, %s3
  %s6 = scalar_select 0, %s5, %s3
  $region1: #{tpu_custom_call.1} parent=0
    #allocation2 [shape = 'u8[8192]{0}', space=vmem, size = 0x2000, scoped, tag = 'input window, operand 0, single buffered']
    #allocation3 [shape = 's32[1]{0}', space=sflag, size = 0x4, scoped, tag = 'scoped memory for tpu_custom_call.1']
    #allocation4 [shape = 's32[1]{0}', space=sflag, size = 0x4, scoped, tag = 'scoped memory for tpu_custom_call.1']
    #allocation5 [shape = 'u8[8192]{0}', space=vmem, size = 0x2000, scoped, tag = 'output window, operand 0, single buffered']
    %7 = vsyncpa [#allocation3], 0
    %8 = vsyncpa [#allocation4], 0
    // Predicated region
    $region2: #{tpu_custom_call.1} parent=1 // pred_check
      _
    $region3: #{tpu_custom_call.1} parent=1 // pred_check_branch
      %10 = sbr.rel (0) target = $region5
    $region4: #{tpu_custom_call.1} parent=1 // pred_region
      %s12 = ssub.s32 256, 256
      %13 = vsyncadd [#allocation3], %s12
      %s15 = sshll.u32 [#allocation2], 4
      %s16 = int_to_ptr.vmem [resolvable:$true] %s15
      %18 = dma.hbm_to_vmem [thread:$0]  %s0, 256, %s16, [#allocation3]
    $region5: #{tpu_custom_call.1} parent=1 // pred_fallthru
      _
    // Predicated region
    $region6: #{tpu_custom_call.1} parent=1 // pred_check
      _
    $region7: #{tpu_custom_call.1} parent=1 // pred_check_branch
      %20 = sbr.rel (0) target = $region9
    $region8: #{tpu_custom_call.1} parent=1 // pred_region
      _
    $region9: #{tpu_custom_call.1} parent=1 // pred_fallthru
      _
    // Predicated region
    $region10: #{tpu_custom_call.1} parent=1 // pred_check
      _
    $region11: #{tpu_custom_call.1} parent=1 // pred_check_branch
      %22 = sbr.rel (0) target = $region13
    $region12: #{tpu_custom_call.1} parent=1 // pred_region
      %23 = dma.done [#allocation3], 256
    $region13: #{tpu_custom_call.1} parent=1 // pred_fallthru
      _
    %v24 = vld [vmem:[#allocation2] sm:$0x3f]
    %v25 = vld [vmem:[#allocation2 + $0x8] sm:$0x3f]
    %v26 = vld [vmem:[%s1] sm:$0x3f]
    %28 = vset.pattern.permute.xlu0 0
    %29 = vperm.xlu0 %28, %v26
    %v30 = vpop.permute.xlu0 %29
    %v32 = vmul.f32 %v24, %v30
    %v33 = vmul.f32 %v25, %v30
    %34 = vset.pattern.permute.xlu0 1
    %35 = vperm.xlu0 %34, %v26
    %v36 = vpop.permute.xlu0 %35
    %v38 = vadd.f32 %v32, %v36
    %v39 = vadd.f32 %v33, %v36
    %40 = vst [vmem:[#allocation5] sm:$0x3f] %v38
    %41 = vst [vmem:[#allocation5 + $0x8] sm:$0x3f] %v39
    // Predicated region
    $region14: #{tpu_custom_call.1} parent=1 // pred_check
      _
    $region15: #{tpu_custom_call.1} parent=1 // pred_check_branch
      %43 = sbr.rel (0) target = $region17
    $region16: #{tpu_custom_call.1} parent=1 // pred_region
      %s45 = ssub.s32 256, 256
      %46 = vsyncadd [#allocation4], %s45
      %s48 = sshll.u32 [#allocation5], 4
      %s49 = int_to_ptr.vmem [resolvable:$true] %s48
      %51 = dma.vmem_to_hbm [thread:$0]  %s49, 256, %s2, [#allocation4]
    $region17: #{tpu_custom_call.1} parent=1 // pred_fallthru
      _
    // Predicated region
    $region18: #{tpu_custom_call.1} parent=1 // pred_check
      _
    $region19: #{tpu_custom_call.1} parent=1 // pred_check_branch
      %53 = sbr.rel (0) target = $region21
    $region20: #{tpu_custom_call.1} parent=1 // pred_region
      %54 = dma.done [#allocation4], 256
    $region21: #{tpu_custom_call.1} parent=1 // pred_fallthru
      _
    %55 = vsyncpa [#allocation3], 1
    %56 = vsyncpa [#allocation4], 1

</llo_original>
